<compile_context>
chip_gen: v5e
topology: v5e:2x2
jax: 0.10.0
libtpu: 0.0.40
codegen_flags: <defaults>
</compile_context>

<pallas_src>
import functools

import jax
import jax.numpy as jnp
from jax.experimental import pallas as pl
from jax.experimental.pallas import tpu as pltpu


_SUBLANE = 8
_NCORES = 2                      # leading parallel axis (v7x megacore); harmless on 1-TC chips
_BLOCK_BYTES = 2 * 1024 * 1024   # ~2 MiB per input block (>= ~85% of HBM roofline already)


# ----------------------------------------------------------------------------
# Elementwise loss (traced inside the kernel; constants are static Python)
# ----------------------------------------------------------------------------
def _elementwise_loss(x, *, mode, gap_min, gap_max, mean, margin):
    if mode == "band":
        return jnp.maximum(jnp.abs(x - mean) - margin, 0.0)
    if mode == "minimization":
        return x if gap_min is None else jnp.maximum(x - gap_min, 0.0)
    if mode == "maximization":
        return -x if gap_max is None else jnp.maximum(gap_max - x, 0.0)
    raise ValueError("bad mode")


# ----------------------------------------------------------------------------
# Pallas kernels
# ----------------------------------------------------------------------------
def _gap_loss_none_kernel(x_ref, o_ref, *, loss_fn):
    # elementwise loss, big lane-dense tile per grid step
    o_ref[...] = loss_fn(x_ref[...])


def _gap_loss_sum_kernel(x_ref, o_ref, acc_ref, *, loss_fn, scale):
    # grid = (core, block); per-core VMEM block accumulator, single final reduce
    i = pl.program_id(1)

    @pl.when(i == 0)
    def _init():
        acc_ref[...] = jnp.zeros_like(acc_ref)

    acc_ref[...] += loss_fn(x_ref[...])          # pure VPU work per step

    @pl.when(i == pl.num_programs(1) - 1)
    def _fin():
        # one cross-lane reduce (XLU) per core; mean's 1/N folded in here
        s = jnp.sum(acc_ref[...]) * scale
        o_ref[...] = jnp.broadcast_to(s, o_ref.shape)


# ----------------------------------------------------------------------------
# Layout helper: lane-dense slab + biggest row tile that fits the VMEM budget
# ----------------------------------------------------------------------------
def _choose_layout(n):
    lanes = 512 if n >= _SUBLANE * 512 else 128
    budget_rows = _BLOCK_BYTES // (lanes * 4)
    budget_rows = max(_SUBLANE, (budget_rows // _SUBLANE) * _SUBLANE)
    rows_needed = -(-n // lanes)
    rows_needed = -(-rows_needed // _SUBLANE) * _SUBLANE
    tm = min(budget_rows, rows_needed)
    return lanes, tm, rows_needed


# ----------------------------------------------------------------------------
# GapLoss wrapper (mirrors the PyTorch module)
# ----------------------------------------------------------------------------
class GapLoss:
    def __init__(self, gap_min=None, gap_max=None, mode="band"):
        self.gap_min = gap_min
        self.gap_max = gap_max
        self.mode = mode
        self.mean = None
        self.margin = None
        if mode not in ["band", "minimization", "maximization"]:
            raise ValueError("mode must be 'band', 'minimization' or 'maximization'")
        if mode == "band" and gap_min is not None and gap_max is not None:
            self.mean = (gap_min + gap_max) / 2.0
            self.margin = (gap_max - gap_min) / 2.0
        elif mode in ("minimization", "maximization"):
            pass
        else:
            raise ValueError(
                f"mode and gap_min, gap_max are not matched! mode: {mode}, "
                f"gap_min: {gap_min}, gap_max: {gap_max}"
            )

        self._loss_fn = functools.partial(
            _elementwise_loss,
            mode=self.mode,
            gap_min=self.gap_min,
            gap_max=self.gap_max,
            mean=self.mean,
            margin=self.margin,
        )

        # padding value whose elementwise loss is exactly 0 for this mode
        if mode == "band":
            self._pad_value = float(self.mean)
        elif mode == "minimization":
            self._pad_value = float(gap_min) if gap_min is not None else 0.0
        else:  # maximization
            self._pad_value = float(gap_max) if gap_max is not None else 0.0

    def __call__(self, x, reduction="mean"):
        if reduction not in ("mean", "sum", "none"):
            raise ValueError("reduction must be 'mean', 'sum' or 'none'")

        x = jnp.asarray(x, jnp.float32)
        orig_shape = x.shape
        n = int(x.size)
        flat = x.reshape(-1)
        lanes, tm, rows_needed = _choose_layout(n)

        if reduction == "none":
            rows = -(-rows_needed // tm) * tm
            padded = jnp.pad(flat, (0, rows * lanes - n),
                             constant_values=self._pad_value).reshape(rows, lanes)
            out = pl.pallas_call(
                functools.partial(_gap_loss_none_kernel, loss_fn=self._loss_fn),
                out_shape=jax.ShapeDtypeStruct((rows, lanes), jnp.float32),
                grid_spec=pltpu.PrefetchScalarGridSpec(
                    num_scalar_prefetch=0,
                    grid=(rows // tm,),
                    in_specs=[pl.BlockSpec((tm, lanes), lambda i: (i, 0))],
                    out_specs=pl.BlockSpec((tm, lanes), lambda i: (i, 0)),
                ),
                compiler_params=pltpu.CompilerParams(
                    dimension_semantics=("parallel",)),
                cost_estimate=pl.CostEstimate(
                    flops=int(3 * rows * lanes),
                    transcendentals=0,
                    bytes_accessed=int(2 * rows * lanes * 4)),
            )(padded)
            loss = out.reshape(-1)[:n].reshape(orig_shape)
            # torch applies .squeeze() inside band/min/max loss, EXCEPT when the
            # corresponding bound is None (min_loss -> x, max_loss -> -x).
            skip_squeeze = ((self.mode == "minimization" and self.gap_min is None) or
                            (self.mode == "maximization" and self.gap_max is None))
            return loss if skip_squeeze else jnp.squeeze(loss)

        # --- mean / sum ------------------------------------------------------
        chunk = _NCORES * tm
        rows = -(-rows_needed // chunk) * chunk
        blocks_per_core = rows // chunk
        padded = jnp.pad(flat, (0, rows * lanes - n),
                         constant_values=self._pad_value).reshape(rows, lanes)
        scale = (1.0 / float(n)) if reduction == "mean" else 1.0

        def in_index_map(c, i):
            return (c * blocks_per_core + i, 0)

        def out_index_map(c, i):
            return (c, 0)

        out = pl.pallas_call(
            functools.partial(_gap_loss_sum_kernel,
                              loss_fn=self._loss_fn, scale=scale),
            out_shape=jax.ShapeDtypeStruct((_NCORES * _SUBLANE, lanes), jnp.float32),
            grid_spec=pltpu.PrefetchScalarGridSpec(
                num_scalar_prefetch=0,
                grid=(_NCORES, blocks_per_core),
                in_specs=[pl.BlockSpec((tm, lanes), in_index_map)],
                out_specs=pl.BlockSpec((_SUBLANE, lanes), out_index_map),
                scratch_shapes=[pltpu.VMEM((tm, lanes), jnp.float32)],
            ),
            compiler_params=pltpu.CompilerParams(
                dimension_semantics=("parallel", "arbitrary")),
            cost_estimate=pl.CostEstimate(
                flops=int(4 * rows * lanes),
                transcendentals=0,
                bytes_accessed=int(rows * lanes * 4)),
        )(padded)

        # per-core partial sums (already scaled); scalar is broadcast across
        # each core's (8, lanes) output block — pick one lane per core and add.
        partials = out[::_SUBLANE, 0]
        return jnp.sum(partials)


# ----------------------------------------------------------------------------
# Pure-JAX reference (mirrors torch semantics, incl. squeeze placement)
# ----------------------------------------------------------------------------
def _ref(x, gap_min, gap_max, mode, reduction):
    if mode == "band":
        mean = (gap_min + gap_max) / 2.0
        margin = (gap_max - gap_min) / 2.0
        loss = jnp.squeeze(jnp.maximum(jnp.abs(x - mean) - margin, 0.0))
    elif mode == "minimization":
        loss = x if gap_min is None else jnp.squeeze(jnp.maximum(x - gap_min, 0.0))
    else:
        loss = -x if gap_max is None else jnp.squeeze(jnp.maximum(gap_max - x, 0.0))
    if reduction == "mean":
        return jnp.mean(loss)
    if reduction == "sum":
        return jnp.sum(loss)
    return loss


if __name__ == "__main__":
    key = jax.random.PRNGKey(0)
    k1, k2 = jax.random.split(key)
    ok = True

    # batch of band-gap predictions from a regressor head: (batch, 1)
    x1 = jax.random.normal(k1, (64, 1), dtype=jnp.float32) * 2.0 + 2.0
    # odd-sized tensor to exercise the flatten / safe-pad path
    x2 = jax.random.normal(k2, (3, 7, 11), dtype=jnp.float32) * 2.0 + 2.0

    # band mode, all reductions, both shapes
    band = GapLoss(gap_min=1.0, gap_max=3.0, mode="band")
    for x in (x1, x2):
        for red in ("mean", "sum", "none"):
            got = jax.block_until_ready(band(x, reduction=red))
            want = _ref(x, 1.0, 3.0, "band", red)
            ok &= got.shape == want.shape
            ok &= bool(jnp.allclose(got, want, rtol=1e-5, atol=1e-5))

    # minimization / maximization (with and without bounds), all reductions
    cases = [
        (GapLoss(gap_min=1.5, mode="minimization"), 1.5, None, "minimization"),
        (GapLoss(mode="minimization"), None, None, "minimization"),
        (GapLoss(gap_max=2.5, mode="maximization"), None, 2.5, "maximization"),
        (GapLoss(mode="maximization"), None, None, "maximization"),
    ]
    for mod, gmin, gmax, mode in cases:
        for red in ("mean", "sum", "none"):
            got = jax.block_until_ready(mod(x2, reduction=red))
            want = _ref(x2, gmin, gmax, mode, red)
            ok &= got.shape == want.shape
            ok &= bool(jnp.allclose(got, want, rtol=1e-5, atol=1e-5))

    if ok:
        print("KERNEL_OK")
    else:
        raise SystemExit("mismatch vs reference")
</pallas_src>

<mosaic_0001>
module attributes {stable_mosaic.version = 11 : i64} {
  func.func @_gap_loss_sum_kernel(%arg0: i32, %arg1: i32, %arg2: memref<8x128xf32, #tpu.memory_space<vmem>>, %arg3: memref<8x128xf32, #tpu.memory_space<vmem>>, %arg4: memref<8x128xf32, #tpu.memory_space<vmem>>) attributes {dimension_semantics = [#tpu.dimension_semantics<parallel>, #tpu.dimension_semantics<arbitrary>], iteration_bounds = array<i64: 2, 1>, scalar_prefetch = 0 : i64, scratch_operands = 1 : i64, tpu.core_type = #tpu.core_type<tc>, window_params = [{transform_indices = @transform_0, window_bounds = array<i64: 8, 128>}, {transform_indices = @transform_1, window_bounds = array<i64: 8, 128>}]} {
    %c0_i32 = arith.constant 0 : i32
    %0 = arith.cmpi eq, %arg1, %c0_i32 : i32
    %1 = arith.extui %0 : i1 to i32
    %c0_i32_0 = arith.constant 0 : i32
    %2 = arith.cmpi ne, %1, %c0_i32_0 : i32
    scf.if %2 {
      %cst_10 = arith.constant 0.000000e+00 : f32
      %17 = vector.broadcast %cst_10 : f32 to vector<8x128xf32>
      %c0_11 = arith.constant 0 : index
      %c0_12 = arith.constant 0 : index
      %18 = vector.load %arg4[%c0_11, %c0_12] : memref<8x128xf32, #tpu.memory_space<vmem>>, vector<8x128xf32>
      tpu.vector_store %arg4[%c0_11, %c0_12], %17 {strides = array<i32>} : memref<8x128xf32, #tpu.memory_space<vmem>>, vector<8x128xf32>,
    } else {
    }
    %c0 = arith.constant 0 : index
    %c0_1 = arith.constant 0 : index
    %3 = vector.load %arg4[%c0, %c0_1] : memref<8x128xf32, #tpu.memory_space<vmem>>, vector<8x128xf32>
    %c0_2 = arith.constant 0 : index
    %c0_3 = arith.constant 0 : index
    %4 = vector.load %arg2[%c0_2, %c0_3] : memref<8x128xf32, #tpu.memory_space<vmem>>, vector<8x128xf32>
    %cst = arith.constant 2.000000e+00 : f32
    %5 = vector.broadcast %cst : f32 to vector<8x128xf32>
    %6 = arith.subf %4, %5 : vector<8x128xf32>
    %7 = math.absf %6 : vector<8x128xf32>
    %cst_4 = arith.constant 1.000000e+00 : f32
    %8 = vector.broadcast %cst_4 : f32 to vector<8x128xf32>
    %9 = arith.subf %7, %8 : vector<8x128xf32>
    %cst_5 = arith.constant 0.000000e+00 : f32
    %10 = vector.broadcast %cst_5 : f32 to vector<8x128xf32>
    %11 = arith.maximumf %9, %10 : vector<8x128xf32>
    %12 = arith.addf %3, %11 : vector<8x128xf32>
    %c0_6 = arith.constant 0 : index
    %c0_7 = arith.constant 0 : index
    %13 = vector.load %arg4[%c0_6, %c0_7] : memref<8x128xf32, #tpu.memory_space<vmem>>, vector<8x128xf32>
    tpu.vector_store %arg4[%c0_6, %c0_7], %12 {strides = array<i32>} : memref<8x128xf32, #tpu.memory_space<vmem>>, vector<8x128xf32>,
    %c0_i32_8 = arith.constant 0 : i32
    %14 = arith.cmpi eq, %arg1, %c0_i32_8 : i32
    %15 = arith.extui %14 : i1 to i32
    %c0_i32_9 = arith.constant 0 : i32
    %16 = arith.cmpi ne, %15, %c0_i32_9 : i32
    scf.if %16 {
      %c0_10 = arith.constant 0 : index
      %c0_11 = arith.constant 0 : index
      %17 = vector.load %arg4[%c0_10, %c0_11] : memref<8x128xf32, #tpu.memory_space<vmem>>, vector<8x128xf32>
      %18 = vector.shape_cast %17 : vector<8x128xf32> to vector<1x8x128xf32>
      %cst_12 = arith.constant dense<0.000000e+00> : vector<1xf32>
      %19 = vector.multi_reduction <add>, %18, %cst_12 [1, 2] : vector<1x8x128xf32> to vector<1xf32>
      %20 = vector.shape_cast %19 : vector<1xf32> to vector<1x1x1xf32>
      %21 = vector.extract %20[0, 0, 0] : f32 from vector<1x1x1xf32>
      %cst_13 = arith.constant 1.562500e-02 : f32
      %22 = arith.mulf %21, %cst_13 : f32
      %23 = vector.broadcast %22 : f32 to vector<8x128xf32>
      %c0_14 = arith.constant 0 : index
      %c0_15 = arith.constant 0 : index
      %24 = vector.load %arg3[%c0_14, %c0_15] : memref<8x128xf32, #tpu.memory_space<vmem>>, vector<8x128xf32>
      tpu.vector_store %arg3[%c0_14, %c0_15], %23 {strides = array<i32>} : memref<8x128xf32, #tpu.memory_space<vmem>>, vector<8x128xf32>,
    } else {
    }
    return
  }
  func.func @transform_0(%arg0: i32, %arg1: i32) -> (i32, i32) {
    %c1_i32 = arith.constant 1 : i32
    %0 = arith.muli %arg0, %c1_i32 : i32
    %1 = arith.addi %0, %arg1 : i32
    %c0_i32 = arith.constant 0 : i32
    %c0_i32_0 = arith.constant 0 : i32
    return %1, %c0_i32 : i32, i32
  }
  func.func @transform_1(%arg0: i32, %arg1: i32) -> (i32, i32) {
    %c0_i32 = arith.constant 0 : i32
    %c0_i32_0 = arith.constant 0 : i32
    return %arg0, %c0_i32 : i32, i32
  }
}

</mosaic_0001>

<llo_original>
// kernel: tpu_custom_call.1
$region0: #{tpu_custom_call.1}
  #allocation0 [shape = 'u32[]', space=smem, size = 0x4, offset = 0x4, fixed_abs, tag = 'smem constant byte address 0x4 - core index']
  #allocation1 [shape = 'u32[72,128]{1,0:T(1,128)}', space=vmem, size = 0x9000, scoped, tag = 'internal scratch']
  #allocation2 [shape = 'f32[8,128]{1,0:T(8,128)}', space=vmem, size = 0x1000, scoped, tag = 'scratch operand']
  %s0 = inlined_call_operand.hbm [shape: f32[16,128], index: 0, kind: input, shape index: {}]
  %s1 = inlined_call_operand.hbm [shape: f32[16,128], index: 1, kind: output, shape index: {}]
  %s2 = sld [smem:[#allocation0]]
  $region49: #{tpu_custom_call.1} parent=0
    _
  %s4 = ssub.s32 1, %s2
  %s5 = scalar_select 0, %s4, %s2
  $region1: #{tpu_custom_call.1} parent=0
    #allocation3 [shape = 'u8[8192]{0}', space=vmem, size = 0x2000, scoped, tag = 'input window, operand 0']
    #allocation4 [shape = 's32[2]{0}', space=sflag, size = 0x8, scoped, tag = 'scoped memory for tpu_custom_call.1']
    #allocation5 [shape = 's32[2]{0}', space=sflag, size = 0x8, scoped, tag = 'scoped memory for tpu_custom_call.1']
    #allocation6 [shape = 'u8[8192]{0}', space=vmem, size = 0x2000, scoped, tag = 'output window, operand 0']
    %6 = vsyncpa [#allocation4], 0
    %s7 = scalar_lea.sflag [#allocation4], 1
    %8 = vsyncpa %s7, 0
    %9 = vsyncpa [#allocation5], 0
    %s10 = scalar_lea.sflag [#allocation5], 1
    %11 = vsyncpa %s10, 0
    loop: start=0, step=1, limit=4
    $region2: #{tpu_custom_call.1} parent=1 // loop_pre_header
      _
    $region3: #{tpu_custom_call.1} parent=1 // loop_header
      %s13 = sphi 0, %s17
      %p14 = scmp.ge.s32.totalorder %s13, 4
      %s20 = sphi 0, %s32
      %s21 = sphi 0, %s28
      %s22 = sphi 0, %s20
      %s23 = sphi 0, %s21
      %s24 = sphi 0, %s22
      %s25 = sphi 0, %s23
      %s37 = sphi 0, %s39
      %s40 = sphi 0, %s37
      %s41 = sphi 0, %s40
      %s57 = sphi 0, %s41
      %s63 = sphi 0, %s65
      %s66 = sphi 0, %s63
      %s67 = sphi 0, %s66
      %s83 = sphi 0, %s67
    $region4: #{tpu_custom_call.1} parent=1 // loop_header_branch
      %16 = sbr.rel (%p14) target = $region8
    $region5: #{tpu_custom_call.1} parent=1 // loop_body
      %s18 = ssub.s32 %s13, 1
      %s19 = ssub.s32 %s13, 2
      %s26 = sadd.s32 1, %s21
      %p27 = scmp.ge.s32.totalorder %s26, 1
      %s28 = scalar_select %p27, 0, %s26
      %s29 = sadd.s32 1, %s20
      %s30 = scalar_select %p27, %s29, %s20
      %p31 = scmp.ge.s32.totalorder %s30, 2
      %s32 = scalar_select %p31, 0, %s30
      %s33 = sadd.s32 %s20, %s21
      %s34 = sadd.s32 %s32, %s28
      %s35 = ssub.s32 %s33, %s34
      %p36 = scmp.eq.s32.totalorder %s35, 0
      %s38 = sadd.s32 %s37, 1
      %s39 = scalar_select %p36, %s37, %s38
      %p42 = pneg %p36
      %p43 = scmp.eq.s32.totalorder %s13, 1
      %p44 = por %p42, %p43
      %p45 = scmp.ne.s32.totalorder %s37, %s40
      %p46 = scmp.eq.s32.totalorder %s13, 0
      %p47 = por %p45, %p46
      %p48 = scmp.ne.s32.totalorder %s37, %s40
      %p49 = scmp.eq.s32.totalorder %s18, 1
      %p50 = por %p48, %p49
      %p51 = scmp.ne.s32.totalorder %s40, %s41
      %p52 = scmp.eq.s32.totalorder %s18, 0
      %p53 = por %p51, %p52
      %p54 = scmp.ne.s32.totalorder %s40, %s41
      %p55 = scmp.eq.s32.totalorder %s19, 1
      %p56 = por %p54, %p55
      %p58 = scmp.ne.s32.totalorder %s41, %s57
      %p59 = scmp.eq.s32.totalorder %s19, 0
      %p60 = por %p58, %p59
      %s61 = ssub.s32 %s20, %s32
      %p62 = scmp.eq.s32.totalorder %s61, 0
      %s64 = sadd.s32 %s63, 1
      %s65 = scalar_select %p62, %s63, %s64
      %p68 = pneg %p62
      %p69 = scmp.eq.s32.totalorder %s13, 1
      %p70 = por %p68, %p69
      %p71 = scmp.ne.s32.totalorder %s63, %s66
      %p72 = scmp.eq.s32.totalorder %s13, 0
      %p73 = por %p71, %p72
      %p74 = scmp.ne.s32.totalorder %s63, %s66
      %p75 = scmp.eq.s32.totalorder %s18, 1
      %p76 = por %p74, %p75
      %p77 = scmp.ne.s32.totalorder %s66, %s67
      %p78 = scmp.eq.s32.totalorder %s18, 0
      %p79 = por %p77, %p78
      %p80 = scmp.ne.s32.totalorder %s66, %s67
      %p81 = scmp.eq.s32.totalorder %s19, 1
      %p82 = por %p80, %p81
      %p84 = scmp.ne.s32.totalorder %s67, %s83
      %p85 = scmp.eq.s32.totalorder %s19, 0
      %p86 = por %p84, %p85
      %p87 = scmp.le.s32.totalorder 1, %s13
      %p88 = scmp.lt.s32.totalorder %s13, 3
      %p89 = pnand %p87, %p88
      %p90 = pneg %p89
      // Predicated region
      $region9: #{tpu_custom_call.1} parent=5 // pred_check
        _
      $region10: #{tpu_custom_call.1} parent=5 // pred_check_branch
        %92 = sbr.rel (%p89) target = $region12
      $region11: #{tpu_custom_call.1} parent=5 // pred_region
        %s93 = ssub.s32 %s13, 1
      $region12: #{tpu_custom_call.1} parent=5 // pred_fallthru
        _
      %p94 = scmp.lt.s32.totalorder %s13, 2
      // Predicated region
      $region13: #{tpu_custom_call.1} parent=5 // pred_check
        %p95 = pneg %p94
      $region14: #{tpu_custom_call.1} parent=5 // pred_check_branch
        %97 = sbr.rel (%p95) target = $region16
      $region15: #{tpu_custom_call.1} parent=5 // pred_region
        // Predicated region
        $region17: #{tpu_custom_call.1} parent=15 // pred_check
          %p98 = pneg %p47
        $region18: #{tpu_custom_call.1} parent=15 // pred_check_branch
          %100 = sbr.rel (%p98) target = $region20
        $region19: #{tpu_custom_call.1} parent=15 // pred_region
          %s101 = sand.u32 %s37, 1
          %s102 = scalar_lea.sflag [#allocation4], %s101
          %s103 = sand.u32 %s37, 1
          %s104 = smul.addr %s103, 8
          %s105 = scalar_lea.vmem [#allocation3], %s104
          %s106 = sadd.s32 %s20, %s21
          %108 = vsyncadd %s102, 0
          %s109 = smul.addr %s106, 8
          %s110 = scalar_lea.hbm %s0, %s109
          %s112 = sshll.u32 %s110, 4
          %s113 = int_to_ptr.hbm [resolvable:$true] %s112
          %s114 = sshll.u32 %s105, 4
          %s115 = int_to_ptr.vmem [resolvable:$true] %s114
          %117 = dma.hbm_to_vmem [thread:$0]  %s113, 128, %s115, %s102
        $region20: #{tpu_custom_call.1} parent=15 // pred_fallthru
          _
      $region16: #{tpu_custom_call.1} parent=5 // pred_fallthru
        _
      %p118 = scmp.le.s32.totalorder 1, %s13
      %p119 = scmp.lt.s32.totalorder %s13, 3
      %p120 = pnand %p118, %p119
      %p121 = pneg %p120
      // Predicated region
      $region21: #{tpu_custom_call.1} parent=5 // pred_check
        _
      $region22: #{tpu_custom_call.1} parent=5 // pred_check_branch
        %123 = sbr.rel (%p120) target = $region24
      $region23: #{tpu_custom_call.1} parent=5 // pred_region
        %s124 = ssub.s32 %s13, 1
        %s125 = sand.u32 %s40, 1
        %s126 = scalar_lea.sflag [#allocation4], %s125
        %s127 = sand.u32 %s40, 1
        %s128 = smul.addr %s127, 8
        %s129 = scalar_lea.vmem [#allocation3], %s128
        // Predicated region
        $region25: #{tpu_custom_call.1} parent=23 // pred_check
          %p130 = pneg %p53
        $region26: #{tpu_custom_call.1} parent=23 // pred_check_branch
          %132 = sbr.rel (%p130) target = $region28
        $region27: #{tpu_custom_call.1} parent=23 // pred_region
          %134 = dma.done %s126, 128
        $region28: #{tpu_custom_call.1} parent=23 // pred_fallthru
          _
        %s135 = sand.u32 %s40, 1
        %s136 = scalar_lea.sflag [#allocation4], %s135
        %s137 = sand.u32 %s40, 1
        %s138 = smul.addr %s137, 8
        %s139 = scalar_lea.vmem [#allocation3], %s138
        %p140 = pneg %p53
        %p141 = pneg %p50
        %p142 = pneg %p79
        %p143 = pneg %p76
        %s144 = sand.u32 %s66, 1
        %s145 = scalar_lea.sflag [#allocation5], %s144
        %s146 = sand.u32 %s66, 1
        %s147 = smul.addr %s146, 8
        %s148 = scalar_lea.vmem [#allocation6], %s147
        %s149 = sadd.s32 %s22, %s23
        %p150 = scmp.eq.s32.totalorder %s23, 0
        // Predicated region
        $region29: #{tpu_custom_call.1} parent=23 // pred_check
          %p151 = pneg %p150
        $region30: #{tpu_custom_call.1} parent=23 // pred_check_branch
          %153 = sbr.rel (%p151) target = $region32
        $region31: #{tpu_custom_call.1} parent=23 // pred_region
          %154 = vst [vmem:[#allocation2] sm:$0xff] 0.0
        $region32: #{tpu_custom_call.1} parent=23 // pred_fallthru
          _
        %v155 = vld [vmem:[#allocation2] sm:$0xff]
        %v156 = vld [vmem:[%s129] sm:$0xff]
        %v157 = vsub.f32 %v156, 2.0
        %v158 = vand.u32 2147483647, %v157
        %v159 = vsub.f32 %v158, 1.0
        %v160 = vmax.f32 %v159, 0.0
        %v161 = vadd.f32 %v155, %v160
        %162 = vst [vmem:[#allocation2] sm:$0xff] %v161
        // Predicated region
        $region33: #{tpu_custom_call.1} parent=23 // pred_check
          %p163 = pneg %p150
        $region34: #{tpu_custom_call.1} parent=23 // pred_check_branch
          %165 = sbr.rel (%p163) target = $region36
        $region35: #{tpu_custom_call.1} parent=23 // pred_region
          %v166 = vld [vmem:[#allocation2] sm:$0xff]
          %167 = vadd.xlane.f32.xlu0 %v166
          %v168 = vpop.xlane.xlu0 %167
          %v169 = vrot.slane %v168, 4
          %v170 = vadd.f32 %v168, %v169
          %v171 = vrot.slane %v170, 2
          %v172 = vadd.f32 %v170, %v171
          %v173 = vrot.slane %v172, 1
          %v174 = vadd.f32 %v172, %v173
          %s175 = vtos %v174
          %s176 = smul.f32 %s175, 0.015625
          %v177 = vstv %s176
          %178 = vst [vmem:[%s148] sm:$0xff] %v177
        $region36: #{tpu_custom_call.1} parent=23 // pred_fallthru
          _
        %s179 = sand.u32 %s66, 1
        %s180 = scalar_lea.sflag [#allocation5], %s179
        %s181 = sand.u32 %s66, 1
        %s182 = smul.addr %s181, 8
        %s183 = scalar_lea.vmem [#allocation6], %s182
        // Predicated region
        $region37: #{tpu_custom_call.1} parent=23 // pred_check
          %p184 = pneg %p76
        $region38: #{tpu_custom_call.1} parent=23 // pred_check_branch
          %186 = sbr.rel (%p184) target = $region40
        $region39: #{tpu_custom_call.1} parent=23 // pred_region
          %188 = vsyncadd %s180, 0
          %s189 = smul.addr %s22, 8
          %s190 = scalar_lea.hbm %s1, %s189
          %s192 = sshll.u32 %s183, 4
          %s193 = int_to_ptr.vmem [resolvable:$true] %s192
          %s194 = sshll.u32 %s190, 4
          %s195 = int_to_ptr.hbm [resolvable:$true] %s194
          %197 = dma.vmem_to_hbm [thread:$0]  %s193, 128, %s195, %s180
        $region40: #{tpu_custom_call.1} parent=23 // pred_fallthru
          _
      $region24: #{tpu_custom_call.1} parent=5 // pred_fallthru
        _
      %p198 = scmp.le.s32.totalorder 2, %s13
      // Predicated region
      $region41: #{tpu_custom_call.1} parent=5 // pred_check
        %p199 = pneg %p198
      $region42: #{tpu_custom_call.1} parent=5 // pred_check_branch
        %201 = sbr.rel (%p199) target = $region44
      $region43: #{tpu_custom_call.1} parent=5 // pred_region
        %s202 = ssub.s32 %s13, 2
        // Predicated region
        $region45: #{tpu_custom_call.1} parent=43 // pred_check
          %p203 = pneg %p82
        $region46: #{tpu_custom_call.1} parent=43 // pred_check_branch
          %205 = sbr.rel (%p203) target = $region48
        $region47: #{tpu_custom_call.1} parent=43 // pred_region
          %s206 = sand.u32 %s67, 1
          %s207 = scalar_lea.sflag [#allocation5], %s206
          %s208 = sand.u32 %s67, 1
          %s209 = smul.addr %s208, 8
          %s210 = scalar_lea.vmem [#allocation6], %s209
          %212 = dma.done %s207, 128
        $region48: #{tpu_custom_call.1} parent=43 // pred_fallthru
          _
      $region44: #{tpu_custom_call.1} parent=5 // pred_fallthru
        _
    $region6: #{tpu_custom_call.1} parent=1 // loop_footer
      %s17 = sadd.s32 1, %s13
    $region7: #{tpu_custom_call.1} parent=1 // loop_footer_branch
      %12 = sbr.rel target = $region3
    $region8: #{tpu_custom_call.1} parent=1 // loop_exit
      _
    %213 = vsyncpa [#allocation4], 1
    %s214 = scalar_lea.sflag [#allocation4], 1
    %215 = vsyncpa %s214, 1
    %216 = vsyncpa [#allocation5], 1
    %s217 = scalar_lea.sflag [#allocation5], 1
    %218 = vsyncpa %s217, 1

</llo_original>
